<compile_context>
chip_gen: v7x
topology: tpu7x:2x2x1
jax: 0.10.0
libtpu: 0.0.40
codegen_flags: <defaults>
</compile_context>

<pallas_src>
import jax
import jax.numpy as jnp
import numpy as np
from jax import lax
from jax.experimental import pallas as pl
from jax.experimental.pallas import tpu as pltpu

_EPS = 1e-5  # BatchNorm1d default eps


# Host-side column permutations that fold the MaxPool1d(2) de-interleave into
# the preceding Linear layer: [0,2,4,...,n-2, 1,3,5,...,n-1].
def _pool_perm(n):
    return np.concatenate([np.arange(0, n, 2), np.arange(1, n, 2)])


_PERM_128 = _pool_perm(128)
_PERM_512 = _pool_perm(512)


def _prelu(h, a):
    # PReLU with a single learnable slope (torch default num_parameters=1).
    return jnp.where(h > 0, h, a * h)


def _linear(h, w, b):
    return jnp.dot(h, w, preferred_element_type=jnp.float32) + b


def _pool_halves(h):
    # MaxPool1d(kernel=2, stride=2) over the feature axis, assuming the
    # producing Linear's columns were pre-permuted [even | odd]:
    # pooled[j] = max(orig[2j], orig[2j+1]).
    k = h.shape[-1] // 2
    return jnp.maximum(h[:, :k], h[:, k:])


def _batchnorm(h, gamma, beta):
    # BatchNorm1d in training mode: per-feature batch statistics, biased
    # variance (divide by N), as PyTorch uses for normalization.
    mean = jnp.mean(h, axis=0, keepdims=True)
    var = jnp.mean((h - mean) ** 2, axis=0, keepdims=True)
    return (h - mean) * lax.rsqrt(var + _EPS) * gamma + beta


def model_kernel(x_ref, w1_ref, b1_ref, w2_ref, b2_ref, w3_ref, b3_ref,
                 w4_ref, b4_ref, w5_ref, b5_ref,
                 g64_ref, be64_ref, g256_ref, be256_ref, a_ref, o_ref):
    a = a_ref[0, 0]                                                   # scalar (SMEM)
    h = _prelu(_linear(x_ref[...], w1_ref[...], b1_ref[...]), a)      # (N, 64)
    h = _prelu(_linear(h, w2_ref[...], b2_ref[...]), a)               # (N, 128) perm'd
    h = _batchnorm(_pool_halves(h), g64_ref[...], be64_ref[...])      # (N, 64)
    h = _prelu(_linear(h, w3_ref[...], b3_ref[...]), a)               # (N, 512) perm'd
    h = _batchnorm(_pool_halves(h), g256_ref[...], be256_ref[...])    # (N, 256)
    h = _prelu(_linear(h, w4_ref[...], b4_ref[...]), a)               # (N, 128) perm'd
    h = _batchnorm(_pool_halves(h), g64_ref[...], be64_ref[...])      # (N, 64)
    o_ref[...] = _linear(h, w5_ref[...], b5_ref[...])                 # (N, 128) lane-dense


def model_forward(x, p):
    n = x.shape[0]

    # Fold the maxpool de-interleave into fc2/fc3/fc4 (host-side, outside the
    # kernel).  Pooled feature order is unchanged, so bn/fc params downstream
    # are untouched.
    w2p, b2p = p["w2"][:, _PERM_128], p["b2"][:, _PERM_128]
    w3p, b3p = p["w3"][:, _PERM_512], p["b3"][:, _PERM_512]
    w4p, b4p = p["w4"][:, _PERM_128], p["b4"][:, _PERM_128]

    # Zero-pad fc5 to 128 output lanes so the kernel's output store is
    # lane-dense (column 0 carries the real result).
    w5p = jnp.zeros((p["w5"].shape[0], 128), jnp.float32).at[:, :1].set(p["w5"])
    b5p = jnp.zeros((1, 128), jnp.float32).at[:, :1].set(p["b5"])

    args = (x,
            p["w1"], p["b1"], w2p, b2p, w3p, b3p, w4p, b4p,
            w5p, b5p,
            p["bn64_g"], p["bn64_b"], p["bn256_g"], p["bn256_b"],
            p["prelu_a"])

    vmem = pl.BlockSpec(memory_space=pltpu.MemorySpace.VMEM)
    smem = pl.BlockSpec(memory_space=pltpu.MemorySpace.SMEM)
    in_specs = [vmem] * (len(args) - 1) + [smem]   # prelu_a scalar -> SMEM

    out = pl.pallas_call(
        model_kernel,
        out_shape=jax.ShapeDtypeStruct((n, 128), jnp.float32),
        in_specs=in_specs,
        out_specs=vmem,
    )(*args)
    return out[:, :1]


def model_forward_ref(x, p):
    # Pure-JAX reference (original un-permuted params, reshape-based maxpool).
    a = p["prelu_a"]

    def prelu(h):
        return jnp.where(h > 0, h, a * h)

    def bn(h, g, b):
        m = h.mean(0, keepdims=True)
        v = ((h - m) ** 2).mean(0, keepdims=True)
        return (h - m) / jnp.sqrt(v + _EPS) * g + b

    def pool(h):
        n, k2 = h.shape
        return jnp.max(h.reshape(n, k2 // 2, 2), axis=-1)

    h = prelu(x @ p["w1"] + p["b1"])
    h = prelu(h @ p["w2"] + p["b2"])
    h = bn(pool(h), p["bn64_g"], p["bn64_b"])
    h = prelu(h @ p["w3"] + p["b3"])
    h = bn(pool(h), p["bn256_g"], p["bn256_b"])
    h = prelu(h @ p["w4"] + p["b4"])
    h = bn(pool(h), p["bn64_g"], p["bn64_b"])
    return h @ p["w5"] + p["b5"]


def init_params(key):
    # Deterministic synthetic init (PyTorch-like uniform(+-1/sqrt(fan_in))).
    def linear_init(k, fan_in, fan_out):
        k1, k2 = jax.random.split(k)
        lim = 1.0 / np.sqrt(fan_in)
        w = jax.random.uniform(k1, (fan_in, fan_out), jnp.float32, -lim, lim)
        b = jax.random.uniform(k2, (1, fan_out), jnp.float32, -lim, lim)
        return w, b

    ks = jax.random.split(key, 9)
    w1, b1 = linear_init(ks[0], 8, 64)      # fc1
    w2, b2 = linear_init(ks[1], 64, 128)    # fc2
    w3, b3 = linear_init(ks[2], 64, 512)    # fc3
    w4, b4 = linear_init(ks[3], 256, 128)   # fc4
    w5, b5 = linear_init(ks[4], 64, 1)      # fc5
    return dict(
        w1=w1, b1=b1, w2=w2, b2=b2, w3=w3, b3=b3, w4=w4, b4=b4, w5=w5, b5=b5,
        prelu_a=jnp.full((1, 1), 0.25, jnp.float32),
        bn64_g=1.0 + 0.1 * jax.random.normal(ks[5], (1, 64), jnp.float32),
        bn64_b=0.1 * jax.random.normal(ks[6], (1, 64), jnp.float32),
        bn256_g=1.0 + 0.1 * jax.random.normal(ks[7], (1, 256), jnp.float32),
        bn256_b=0.1 * jax.random.normal(ks[8], (1, 256), jnp.float32),
    )


if __name__ == "__main__":
    key = jax.random.PRNGKey(0)
    pkey, xkey = jax.random.split(key)
    params = init_params(pkey)

    N, D = 8, 8                     # (batch, input_size)
    x = jax.random.normal(xkey, (N, D), jnp.float32)

    out = jax.block_until_ready(model_forward(x, params))
    assert out.shape == (N, 1), out.shape

    ref = model_forward_ref(x, params)
    np.testing.assert_allclose(np.asarray(out), np.asarray(ref),
                               rtol=2e-2, atol=2e-2)
    print("KERNEL_OK")
</pallas_src>

<mosaic_0001>
module attributes {stable_mosaic.version = 11 : i64} {
  func.func @model_kernel(%arg0: memref<8x8xf32, #tpu.memory_space<vmem>>, %arg1: memref<8x64xf32, #tpu.memory_space<vmem>>, %arg2: memref<1x64xf32, #tpu.memory_space<vmem>>, %arg3: memref<64x128xf32, #tpu.memory_space<vmem>>, %arg4: memref<1x128xf32, #tpu.memory_space<vmem>>, %arg5: memref<64x512xf32, #tpu.memory_space<vmem>>, %arg6: memref<1x512xf32, #tpu.memory_space<vmem>>, %arg7: memref<256x128xf32, #tpu.memory_space<vmem>>, %arg8: memref<1x128xf32, #tpu.memory_space<vmem>>, %arg9: memref<64x128xf32, #tpu.memory_space<vmem>>, %arg10: memref<1x128xf32, #tpu.memory_space<vmem>>, %arg11: memref<1x64xf32, #tpu.memory_space<vmem>>, %arg12: memref<1x64xf32, #tpu.memory_space<vmem>>, %arg13: memref<1x256xf32, #tpu.memory_space<vmem>>, %arg14: memref<1x256xf32, #tpu.memory_space<vmem>>, %arg15: memref<1x1xf32, #tpu.memory_space<smem>>, %arg16: memref<8x128xf32, #tpu.memory_space<vmem>>) attributes {dimension_semantics = [], scalar_prefetch = 0 : i64, scratch_operands = 0 : i64, tpu.core_type = #tpu.core_type<tc>} {
    %c0 = arith.constant 0 : index
    %c0_0 = arith.constant 0 : index
    %0 = memref.load %arg15[%c0, %c0_0] : memref<1x1xf32, #tpu.memory_space<smem>>
    %c0_1 = arith.constant 0 : index
    %c0_2 = arith.constant 0 : index
    %1 = vector.load %arg0[%c0_1, %c0_2] : memref<8x8xf32, #tpu.memory_space<vmem>>, vector<8x8xf32>
    %c0_3 = arith.constant 0 : index
    %c0_4 = arith.constant 0 : index
    %2 = vector.load %arg1[%c0_3, %c0_4] : memref<8x64xf32, #tpu.memory_space<vmem>>, vector<8x64xf32>
    %c0_5 = arith.constant 0 : index
    %c0_6 = arith.constant 0 : index
    %3 = vector.load %arg2[%c0_5, %c0_6] : memref<1x64xf32, #tpu.memory_space<vmem>>, vector<1x64xf32>
    %cst = arith.constant dense<0.000000e+00> : vector<8x64xf32>
    %4 = tpu.matmul %1, %2, %cst {dimension_numbers = #tpu.dot_dimension_numbers<[1], [0], [0], [1], [0, 0, 1, 1], [], []>} : vector<8x8xf32>, vector<8x64xf32>, vector<8x64xf32> -> vector<8x64xf32>
    %5 = vector.broadcast %3 : vector<1x64xf32> to vector<8x64xf32>
    %6 = arith.addf %4, %5 : vector<8x64xf32>
    %cst_7 = arith.constant 0.000000e+00 : f32
    %7 = vector.broadcast %cst_7 : f32 to vector<8x64xf32>
    %8 = arith.cmpf ogt, %6, %7 : vector<8x64xf32>
    %9 = vector.broadcast %0 : f32 to vector<8x64xf32>
    %10 = arith.mulf %9, %6 : vector<8x64xf32>
    %11 = arith.select %8, %6, %10 : vector<8x64xi1>, vector<8x64xf32>
    %c0_8 = arith.constant 0 : index
    %c0_9 = arith.constant 0 : index
    %12 = vector.load %arg3[%c0_8, %c0_9] : memref<64x128xf32, #tpu.memory_space<vmem>>, vector<64x128xf32>
    %c0_10 = arith.constant 0 : index
    %c0_11 = arith.constant 0 : index
    %13 = vector.load %arg4[%c0_10, %c0_11] : memref<1x128xf32, #tpu.memory_space<vmem>>, vector<1x128xf32>
    %cst_12 = arith.constant dense<0.000000e+00> : vector<8x128xf32>
    %14 = tpu.matmul %11, %12, %cst_12 {dimension_numbers = #tpu.dot_dimension_numbers<[1], [0], [0], [1], [0, 0, 1, 1], [], []>} : vector<8x64xf32>, vector<64x128xf32>, vector<8x128xf32> -> vector<8x128xf32>
    %15 = vector.broadcast %13 : vector<1x128xf32> to vector<8x128xf32>
    %16 = arith.addf %14, %15 : vector<8x128xf32>
    %cst_13 = arith.constant 0.000000e+00 : f32
    %17 = vector.broadcast %cst_13 : f32 to vector<8x128xf32>
    %18 = arith.cmpf ogt, %16, %17 : vector<8x128xf32>
    %19 = vector.broadcast %0 : f32 to vector<8x128xf32>
    %20 = arith.mulf %19, %16 : vector<8x128xf32>
    %21 = arith.select %18, %16, %20 : vector<8x128xi1>, vector<8x128xf32>
    %22 = vector.extract_strided_slice %21 {offsets = [0, 0], sizes = [8, 64], strides = [1, 1]} : vector<8x128xf32> to vector<8x64xf32>
    %23 = vector.extract_strided_slice %21 {offsets = [0, 64], sizes = [8, 64], strides = [1, 1]} : vector<8x128xf32> to vector<8x64xf32>
    %24 = arith.maximumf %22, %23 : vector<8x64xf32>
    %c0_14 = arith.constant 0 : index
    %c0_15 = arith.constant 0 : index
    %25 = vector.load %arg11[%c0_14, %c0_15] : memref<1x64xf32, #tpu.memory_space<vmem>>, vector<1x64xf32>
    %c0_16 = arith.constant 0 : index
    %c0_17 = arith.constant 0 : index
    %26 = vector.load %arg12[%c0_16, %c0_17] : memref<1x64xf32, #tpu.memory_space<vmem>>, vector<1x64xf32>
    %cst_18 = arith.constant dense<0.000000e+00> : vector<64xf32>
    %27 = vector.multi_reduction <add>, %24, %cst_18 [0] : vector<8x64xf32> to vector<64xf32>
    %28 = vector.shape_cast %27 : vector<64xf32> to vector<1x64xf32>
    %cst_19 = arith.constant 8.000000e+00 : f32
    %29 = vector.broadcast %cst_19 : f32 to vector<1x64xf32>
    %30 = arith.divf %28, %29 : vector<1x64xf32>
    %31 = vector.broadcast %30 : vector<1x64xf32> to vector<8x64xf32>
    %32 = arith.subf %24, %31 : vector<8x64xf32>
    %33 = arith.mulf %32, %32 : vector<8x64xf32>
    %cst_20 = arith.constant dense<0.000000e+00> : vector<64xf32>
    %34 = vector.multi_reduction <add>, %33, %cst_20 [0] : vector<8x64xf32> to vector<64xf32>
    %35 = vector.shape_cast %34 : vector<64xf32> to vector<1x64xf32>
    %cst_21 = arith.constant 8.000000e+00 : f32
    %36 = vector.broadcast %cst_21 : f32 to vector<1x64xf32>
    %37 = arith.divf %35, %36 : vector<1x64xf32>
    %38 = vector.broadcast %30 : vector<1x64xf32> to vector<8x64xf32>
    %39 = arith.subf %24, %38 : vector<8x64xf32>
    %cst_22 = arith.constant 9.99999974E-6 : f32
    %40 = vector.broadcast %cst_22 : f32 to vector<1x64xf32>
    %41 = arith.addf %37, %40 : vector<1x64xf32>
    %42 = math.rsqrt %41 : vector<1x64xf32>
    %43 = vector.broadcast %42 : vector<1x64xf32> to vector<8x64xf32>
    %44 = arith.mulf %39, %43 : vector<8x64xf32>
    %45 = vector.broadcast %25 : vector<1x64xf32> to vector<8x64xf32>
    %46 = arith.mulf %44, %45 : vector<8x64xf32>
    %47 = vector.broadcast %26 : vector<1x64xf32> to vector<8x64xf32>
    %48 = arith.addf %46, %47 : vector<8x64xf32>
    %c0_23 = arith.constant 0 : index
    %c0_24 = arith.constant 0 : index
    %49 = vector.load %arg5[%c0_23, %c0_24] : memref<64x512xf32, #tpu.memory_space<vmem>>, vector<64x512xf32>
    %c0_25 = arith.constant 0 : index
    %c0_26 = arith.constant 0 : index
    %50 = vector.load %arg6[%c0_25, %c0_26] : memref<1x512xf32, #tpu.memory_space<vmem>>, vector<1x512xf32>
    %cst_27 = arith.constant dense<0.000000e+00> : vector<8x512xf32>
    %51 = tpu.matmul %48, %49, %cst_27 {dimension_numbers = #tpu.dot_dimension_numbers<[1], [0], [0], [1], [0, 0, 1, 1], [], []>} : vector<8x64xf32>, vector<64x512xf32>, vector<8x512xf32> -> vector<8x512xf32>
    %52 = vector.broadcast %50 : vector<1x512xf32> to vector<8x512xf32>
    %53 = arith.addf %51, %52 : vector<8x512xf32>
    %cst_28 = arith.constant 0.000000e+00 : f32
    %54 = vector.broadcast %cst_28 : f32 to vector<8x512xf32>
    %55 = arith.cmpf ogt, %53, %54 : vector<8x512xf32>
    %56 = vector.broadcast %0 : f32 to vector<8x512xf32>
    %57 = arith.mulf %56, %53 : vector<8x512xf32>
    %58 = arith.select %55, %53, %57 : vector<8x512xi1>, vector<8x512xf32>
    %59 = vector.extract_strided_slice %58 {offsets = [0, 0], sizes = [8, 256], strides = [1, 1]} : vector<8x512xf32> to vector<8x256xf32>
    %60 = vector.extract_strided_slice %58 {offsets = [0, 256], sizes = [8, 256], strides = [1, 1]} : vector<8x512xf32> to vector<8x256xf32>
    %61 = arith.maximumf %59, %60 : vector<8x256xf32>
    %c0_29 = arith.constant 0 : index
    %c0_30 = arith.constant 0 : index
    %62 = vector.load %arg13[%c0_29, %c0_30] : memref<1x256xf32, #tpu.memory_space<vmem>>, vector<1x256xf32>
    %c0_31 = arith.constant 0 : index
    %c0_32 = arith.constant 0 : index
    %63 = vector.load %arg14[%c0_31, %c0_32] : memref<1x256xf32, #tpu.memory_space<vmem>>, vector<1x256xf32>
    %cst_33 = arith.constant dense<0.000000e+00> : vector<256xf32>
    %64 = vector.multi_reduction <add>, %61, %cst_33 [0] : vector<8x256xf32> to vector<256xf32>
    %65 = vector.shape_cast %64 : vector<256xf32> to vector<1x256xf32>
    %cst_34 = arith.constant 8.000000e+00 : f32
    %66 = vector.broadcast %cst_34 : f32 to vector<1x256xf32>
    %67 = arith.divf %65, %66 : vector<1x256xf32>
    %68 = vector.broadcast %67 : vector<1x256xf32> to vector<8x256xf32>
    %69 = arith.subf %61, %68 : vector<8x256xf32>
    %70 = arith.mulf %69, %69 : vector<8x256xf32>
    %cst_35 = arith.constant dense<0.000000e+00> : vector<256xf32>
    %71 = vector.multi_reduction <add>, %70, %cst_35 [0] : vector<8x256xf32> to vector<256xf32>
    %72 = vector.shape_cast %71 : vector<256xf32> to vector<1x256xf32>
    %cst_36 = arith.constant 8.000000e+00 : f32
    %73 = vector.broadcast %cst_36 : f32 to vector<1x256xf32>
    %74 = arith.divf %72, %73 : vector<1x256xf32>
    %75 = vector.broadcast %67 : vector<1x256xf32> to vector<8x256xf32>
    %76 = arith.subf %61, %75 : vector<8x256xf32>
    %cst_37 = arith.constant 9.99999974E-6 : f32
    %77 = vector.broadcast %cst_37 : f32 to vector<1x256xf32>
    %78 = arith.addf %74, %77 : vector<1x256xf32>
    %79 = math.rsqrt %78 : vector<1x256xf32>
    %80 = vector.broadcast %79 : vector<1x256xf32> to vector<8x256xf32>
    %81 = arith.mulf %76, %80 : vector<8x256xf32>
    %82 = vector.broadcast %62 : vector<1x256xf32> to vector<8x256xf32>
    %83 = arith.mulf %81, %82 : vector<8x256xf32>
    %84 = vector.broadcast %63 : vector<1x256xf32> to vector<8x256xf32>
    %85 = arith.addf %83, %84 : vector<8x256xf32>
    %c0_38 = arith.constant 0 : index
    %c0_39 = arith.constant 0 : index
    %86 = vector.load %arg7[%c0_38, %c0_39] : memref<256x128xf32, #tpu.memory_space<vmem>>, vector<256x128xf32>
    %c0_40 = arith.constant 0 : index
    %c0_41 = arith.constant 0 : index
    %87 = vector.load %arg8[%c0_40, %c0_41] : memref<1x128xf32, #tpu.memory_space<vmem>>, vector<1x128xf32>
    %cst_42 = arith.constant dense<0.000000e+00> : vector<8x128xf32>
    %88 = tpu.matmul %85, %86, %cst_42 {dimension_numbers = #tpu.dot_dimension_numbers<[1], [0], [0], [1], [0, 0, 1, 1], [], []>} : vector<8x256xf32>, vector<256x128xf32>, vector<8x128xf32> -> vector<8x128xf32>
    %89 = vector.broadcast %87 : vector<1x128xf32> to vector<8x128xf32>
    %90 = arith.addf %88, %89 : vector<8x128xf32>
    %cst_43 = arith.constant 0.000000e+00 : f32
    %91 = vector.broadcast %cst_43 : f32 to vector<8x128xf32>
    %92 = arith.cmpf ogt, %90, %91 : vector<8x128xf32>
    %93 = vector.broadcast %0 : f32 to vector<8x128xf32>
    %94 = arith.mulf %93, %90 : vector<8x128xf32>
    %95 = arith.select %92, %90, %94 : vector<8x128xi1>, vector<8x128xf32>
    %96 = vector.extract_strided_slice %95 {offsets = [0, 0], sizes = [8, 64], strides = [1, 1]} : vector<8x128xf32> to vector<8x64xf32>
    %97 = vector.extract_strided_slice %95 {offsets = [0, 64], sizes = [8, 64], strides = [1, 1]} : vector<8x128xf32> to vector<8x64xf32>
    %98 = arith.maximumf %96, %97 : vector<8x64xf32>
    %c0_44 = arith.constant 0 : index
    %c0_45 = arith.constant 0 : index
    %99 = vector.load %arg11[%c0_44, %c0_45] : memref<1x64xf32, #tpu.memory_space<vmem>>, vector<1x64xf32>
    %c0_46 = arith.constant 0 : index
    %c0_47 = arith.constant 0 : index
    %100 = vector.load %arg12[%c0_46, %c0_47] : memref<1x64xf32, #tpu.memory_space<vmem>>, vector<1x64xf32>
    %cst_48 = arith.constant dense<0.000000e+00> : vector<64xf32>
    %101 = vector.multi_reduction <add>, %98, %cst_48 [0] : vector<8x64xf32> to vector<64xf32>
    %102 = vector.shape_cast %101 : vector<64xf32> to vector<1x64xf32>
    %cst_49 = arith.constant 8.000000e+00 : f32
    %103 = vector.broadcast %cst_49 : f32 to vector<1x64xf32>
    %104 = arith.divf %102, %103 : vector<1x64xf32>
    %105 = vector.broadcast %104 : vector<1x64xf32> to vector<8x64xf32>
    %106 = arith.subf %98, %105 : vector<8x64xf32>
    %107 = arith.mulf %106, %106 : vector<8x64xf32>
    %cst_50 = arith.constant dense<0.000000e+00> : vector<64xf32>
    %108 = vector.multi_reduction <add>, %107, %cst_50 [0] : vector<8x64xf32> to vector<64xf32>
    %109 = vector.shape_cast %108 : vector<64xf32> to vector<1x64xf32>
    %cst_51 = arith.constant 8.000000e+00 : f32
    %110 = vector.broadcast %cst_51 : f32 to vector<1x64xf32>
    %111 = arith.divf %109, %110 : vector<1x64xf32>
    %112 = vector.broadcast %104 : vector<1x64xf32> to vector<8x64xf32>
    %113 = arith.subf %98, %112 : vector<8x64xf32>
    %cst_52 = arith.constant 9.99999974E-6 : f32
    %114 = vector.broadcast %cst_52 : f32 to vector<1x64xf32>
    %115 = arith.addf %111, %114 : vector<1x64xf32>
    %116 = math.rsqrt %115 : vector<1x64xf32>
    %117 = vector.broadcast %116 : vector<1x64xf32> to vector<8x64xf32>
    %118 = arith.mulf %113, %117 : vector<8x64xf32>
    %119 = vector.broadcast %99 : vector<1x64xf32> to vector<8x64xf32>
    %120 = arith.mulf %118, %119 : vector<8x64xf32>
    %121 = vector.broadcast %100 : vector<1x64xf32> to vector<8x64xf32>
    %122 = arith.addf %120, %121 : vector<8x64xf32>
    %c0_53 = arith.constant 0 : index
    %c0_54 = arith.constant 0 : index
    %123 = vector.load %arg9[%c0_53, %c0_54] : memref<64x128xf32, #tpu.memory_space<vmem>>, vector<64x128xf32>
    %c0_55 = arith.constant 0 : index
    %c0_56 = arith.constant 0 : index
    %124 = vector.load %arg10[%c0_55, %c0_56] : memref<1x128xf32, #tpu.memory_space<vmem>>, vector<1x128xf32>
    %cst_57 = arith.constant dense<0.000000e+00> : vector<8x128xf32>
    %125 = tpu.matmul %122, %123, %cst_57 {dimension_numbers = #tpu.dot_dimension_numbers<[1], [0], [0], [1], [0, 0, 1, 1], [], []>} : vector<8x64xf32>, vector<64x128xf32>, vector<8x128xf32> -> vector<8x128xf32>
    %126 = vector.broadcast %124 : vector<1x128xf32> to vector<8x128xf32>
    %127 = arith.addf %125, %126 : vector<8x128xf32>
    %c0_58 = arith.constant 0 : index
    %c0_59 = arith.constant 0 : index
    %128 = vector.load %arg16[%c0_58, %c0_59] : memref<8x128xf32, #tpu.memory_space<vmem>>, vector<8x128xf32>
    tpu.vector_store %arg16[%c0_58, %c0_59], %127 {strides = array<i32>} : memref<8x128xf32, #tpu.memory_space<vmem>>, vector<8x128xf32>,
    return
  }
}

</mosaic_0001>

<llo_original>
// kernel: tpu_custom_call.1
$region0: #{tpu_custom_call.1}
  #allocation0 [shape = 'u32[]', space=smem, size = 0x4, offset = 0x4, fixed_abs, tag = 'smem constant byte address 0x4 - core index']
  #allocation1 [shape = 'u32[144,128]{1,0:T(1,128)}', space=vmem, size = 0x12000, scoped, tag = 'internal scratch']
  #allocation2 [shape = 'f32[1,1]{1,0:T(1,128)S(6)}', space=smem, size = 0x200, scoped, tag = 'scoped memory for tpu_custom_call.1']
  %s0 = inlined_call_operand.hbm [shape: f32[8,8], index: 0, kind: input, shape index: {}]
  %s1 = inlined_call_operand.hbm [shape: f32[8,64], index: 1, kind: input, shape index: {}]
  %s2 = inlined_call_operand.vmem [shape: f32[1,64], index: 2, kind: input, shape index: {}]
  %s3 = inlined_call_operand.hbm [shape: f32[64,128], index: 3, kind: input, shape index: {}]
  %s4 = inlined_call_operand.vmem [shape: f32[1,128], index: 4, kind: input, shape index: {}]
  %s5 = inlined_call_operand.hbm [shape: f32[64,512], index: 5, kind: input, shape index: {}]
  %s6 = inlined_call_operand.vmem [shape: f32[1,512], index: 6, kind: input, shape index: {}]
  %s7 = inlined_call_operand.hbm [shape: f32[256,128], index: 7, kind: input, shape index: {}]
  %s8 = inlined_call_operand.vmem [shape: f32[1,128], index: 8, kind: input, shape index: {}]
  %s9 = inlined_call_operand.hbm [shape: f32[64,128], index: 9, kind: input, shape index: {}]
  %s10 = inlined_call_operand.vmem [shape: f32[1,128], index: 10, kind: input, shape index: {}]
  %s11 = inlined_call_operand.vmem [shape: f32[1,64], index: 11, kind: input, shape index: {}]
  %s12 = inlined_call_operand.vmem [shape: f32[1,64], index: 12, kind: input, shape index: {}]
  %s13 = inlined_call_operand.vmem [shape: f32[1,256], index: 13, kind: input, shape index: {}]
  %s14 = inlined_call_operand.vmem [shape: f32[1,256], index: 14, kind: input, shape index: {}]
  %s15 = inlined_call_operand.<no memory space> [shape: f32[1,1], index: 15, kind: input, shape index: {}]
  %s16 = inlined_call_operand.hbm [shape: f32[8,128], index: 16, kind: output, shape index: {}]
  %s17 = sld [smem:[#allocation0]]
  $region98: #{tpu_custom_call.1} parent=0
    _
  %s19 = ssub.s32 1, %s17
  %s20 = scalar_select 0, %s19, %s17
  %21 = sst [smem:[#allocation2]] %s15
  $region1: #{tpu_custom_call.1} parent=0
    #allocation3 [shape = 'u8[4096]{0}', space=vmem, size = 0x1000, scoped, tag = 'input window, operand 0, single buffered']
    #allocation4 [shape = 's32[1]{0}', space=sflag, size = 0x4, scoped, tag = 'scoped memory for tpu_custom_call.1']
    #allocation5 [shape = 's32[1]{0}', space=sflag, size = 0x4, scoped, tag = 'scoped memory for tpu_custom_call.1']
    #allocation6 [shape = 'u8[4096]{0}', space=vmem, size = 0x1000, scoped, tag = 'input window, operand 1, single buffered']
    #allocation7 [shape = 's32[1]{0}', space=sflag, size = 0x4, scoped, tag = 'scoped memory for tpu_custom_call.1']
    #allocation8 [shape = 'u8[32768]{0}', space=vmem, size = 0x8000, scoped, tag = 'input window, operand 3, single buffered']
    #allocation9 [shape = 'u8[131072]{0}', space=vmem, size = 0x20000, scoped, tag = 'input window, operand 5, single buffered']
    #allocation10 [shape = 's32[1]{0}', space=sflag, size = 0x4, scoped, tag = 'scoped memory for tpu_custom_call.1']
    #allocation11 [shape = 'u8[131072]{0}', space=vmem, size = 0x20000, scoped, tag = 'input window, operand 7, single buffered']
    #allocation12 [shape = 'u8[32768]{0}', space=vmem, size = 0x8000, scoped, tag = 'input window, operand 9, single buffered']
    #allocation13 [shape = 's32[1]{0}', space=sflag, size = 0x4, scoped, tag = 'scoped memory for tpu_custom_call.1']
    #allocation14 [shape = 'u8[4096]{0}', space=vmem, size = 0x1000, scoped, tag = 'output window, operand 0, single buffered']
    %22 = vsyncpa [#allocation4], 0
    %23 = vsyncpa [#allocation7], 0
    %24 = vsyncpa [#allocation10], 0
    %25 = vsyncpa [#allocation13], 0
    %26 = vsyncpa [#allocation5], 0
    // Predicated region
    $region2: #{tpu_custom_call.1} parent=1 // pred_check
      _
    $region3: #{tpu_custom_call.1} parent=1 // pred_check_branch
      %28 = sbr.rel (0) target = $region5
    $region4: #{tpu_custom_call.1} parent=1 // pred_region
      %s30 = ssub.s32 128, 128
      %31 = vsyncadd [#allocation4], %s30
      %s33 = sshll.u32 [#allocation3], 4
      %s34 = int_to_ptr.vmem [resolvable:$true] %s33
      %36 = dma.hbm_to_vmem [thread:$0]  %s0, 128, %s34, [#allocation4]
    $region5: #{tpu_custom_call.1} parent=1 // pred_fallthru
      _
    // Predicated region
    $region6: #{tpu_custom_call.1} parent=1 // pred_check
      _
    $region7: #{tpu_custom_call.1} parent=1 // pred_check_branch
      %38 = sbr.rel (0) target = $region9
    $region8: #{tpu_custom_call.1} parent=1 // pred_region
      %s40 = ssub.s32 128, 128
      %41 = vsyncadd [#allocation7], %s40
      %s43 = sshll.u32 [#allocation6], 4
      %s44 = int_to_ptr.vmem [resolvable:$true] %s43
      %46 = dma.hbm_to_vmem [thread:$0]  %s1, 128, %s44, [#allocation7]
    $region9: #{tpu_custom_call.1} parent=1 // pred_fallthru
      _
    // Predicated region
    $region10: #{tpu_custom_call.1} parent=1 // pred_check
      _
    $region11: #{tpu_custom_call.1} parent=1 // pred_check_branch
      %48 = sbr.rel (0) target = $region13
    $region12: #{tpu_custom_call.1} parent=1 // pred_region
      _
    $region13: #{tpu_custom_call.1} parent=1 // pred_fallthru
      _
    // Predicated region
    $region14: #{tpu_custom_call.1} parent=1 // pred_check
      _
    $region15: #{tpu_custom_call.1} parent=1 // pred_check_branch
      %50 = sbr.rel (0) target = $region17
    $region16: #{tpu_custom_call.1} parent=1 // pred_region
      %s52 = ssub.s32 1024, 1024
      %53 = vsyncadd [#allocation7], %s52
      %s54 = sshll.u32 [#allocation8], 4
      %s55 = int_to_ptr.vmem [resolvable:$true] %s54
      %60 = dma.hbm_to_vmem [thread:$0]  %s3, 1024, %s55, [#allocation7], 128, 128, 8
    $region17: #{tpu_custom_call.1} parent=1 // pred_fallthru
      _
    // Predicated region
    $region18: #{tpu_custom_call.1} parent=1 // pred_check
      _
    $region19: #{tpu_custom_call.1} parent=1 // pred_check_branch
      %62 = sbr.rel (0) target = $region21
    $region20: #{tpu_custom_call.1} parent=1 // pred_region
      _
    $region21: #{tpu_custom_call.1} parent=1 // pred_fallthru
      _
    // Predicated region
    $region22: #{tpu_custom_call.1} parent=1 // pred_check
      _
    $region23: #{tpu_custom_call.1} parent=1 // pred_check_branch
      %64 = sbr.rel (0) target = $region25
    $region24: #{tpu_custom_call.1} parent=1 // pred_region
      %s66 = ssub.s32 4096, 4096
      %67 = vsyncadd [#allocation10], %s66
      %s68 = sshll.u32 [#allocation9], 4
      %s69 = int_to_ptr.vmem [resolvable:$true] %s68
      %74 = dma.hbm_to_vmem [thread:$0]  %s5, 4096, %s69, [#allocation10], 512, 512, 32
    $region25: #{tpu_custom_call.1} parent=1 // pred_fallthru
      _
    // Predicated region
    $region26: #{tpu_custom_call.1} parent=1 // pred_check
      _
    $region27: #{tpu_custom_call.1} parent=1 // pred_check_branch
      %76 = sbr.rel (0) target = $region29
    $region28: #{tpu_custom_call.1} parent=1 // pred_region
      _
    $region29: #{tpu_custom_call.1} parent=1 // pred_fallthru
      _
    // Predicated region
    $region30: #{tpu_custom_call.1} parent=1 // pred_check
      _
    $region31: #{tpu_custom_call.1} parent=1 // pred_check_branch
      %78 = sbr.rel (0) target = $region33
    $region32: #{tpu_custom_call.1} parent=1 // pred_region
      %s80 = ssub.s32 4096, 4096
      %81 = vsyncadd [#allocation10], %s80
      %s82 = sshll.u32 [#allocation11], 4
      %s83 = int_to_ptr.vmem [resolvable:$true] %s82
      %88 = dma.hbm_to_vmem [thread:$0]  %s7, 4096, %s83, [#allocation10], 128, 128, 8
    $region33: #{tpu_custom_call.1} parent=1 // pred_fallthru
      _
    // Predicated region
    $region34: #{tpu_custom_call.1} parent=1 // pred_check
      _
    $region35: #{tpu_custom_call.1} parent=1 // pred_check_branch
      %90 = sbr.rel (0) target = $region37
    $region36: #{tpu_custom_call.1} parent=1 // pred_region
      _
    $region37: #{tpu_custom_call.1} parent=1 // pred_fallthru
      _
    // Predicated region
    $region38: #{tpu_custom_call.1} parent=1 // pred_check
      _
    $region39: #{tpu_custom_call.1} parent=1 // pred_check_branch
      %92 = sbr.rel (0) target = $region41
    $region40: #{tpu_custom_call.1} parent=1 // pred_region
      %s94 = ssub.s32 1024, 1024
      %95 = vsyncadd [#allocation13], %s94
      %s96 = sshll.u32 [#allocation12], 4
      %s97 = int_to_ptr.vmem [resolvable:$true] %s96
      %102 = dma.hbm_to_vmem [thread:$0]  %s9, 1024, %s97, [#allocation13], 128, 128, 8
    $region41: #{tpu_custom_call.1} parent=1 // pred_fallthru
      _
    // Predicated region
    $region42: #{tpu_custom_call.1} parent=1 // pred_check
      _
    $region43: #{tpu_custom_call.1} parent=1 // pred_check_branch
      %104 = sbr.rel (0) target = $region45
    $region44: #{tpu_custom_call.1} parent=1 // pred_region
      _
    $region45: #{tpu_custom_call.1} parent=1 // pred_fallthru
      _
    // Predicated region
    $region46: #{tpu_custom_call.1} parent=1 // pred_check
      _
    $region47: #{tpu_custom_call.1} parent=1 // pred_check_branch
      %106 = sbr.rel (0) target = $region49
    $region48: #{tpu_custom_call.1} parent=1 // pred_region
      _
    $region49: #{tpu_custom_call.1} parent=1 // pred_fallthru
      _
    // Predicated region
    $region50: #{tpu_custom_call.1} parent=1 // pred_check
      _
    $region51: #{tpu_custom_call.1} parent=1 // pred_check_branch
      %108 = sbr.rel (0) target = $region53
    $region52: #{tpu_custom_call.1} parent=1 // pred_region
      _
    $region53: #{tpu_custom_call.1} parent=1 // pred_fallthru
      _
    // Predicated region
    $region54: #{tpu_custom_call.1} parent=1 // pred_check
      _
    $region55: #{tpu_custom_call.1} parent=1 // pred_check_branch
      %110 = sbr.rel (0) target = $region57
    $region56: #{tpu_custom_call.1} parent=1 // pred_region
      _
    $region57: #{tpu_custom_call.1} parent=1 // pred_fallthru
      _
    // Predicated region
    $region58: #{tpu_custom_call.1} parent=1 // pred_check
      _
    $region59: #{tpu_custom_call.1} parent=1 // pred_check_branch
      %112 = sbr.rel (0) target = $region61
    $region60: #{tpu_custom_call.1} parent=1 // pred_region
      _
    $region61: #{tpu_custom_call.1} parent=1 // pred_fallthru
      _
    // Predicated region
    $region62: #{tpu_custom_call.1} parent=1 // pred_check
      _
    $region63: #{tpu_custom_call.1} parent=1 // pred_check_branch
      %114 = sbr.rel (0) target = $region65
    $region64: #{tpu_custom_call.1} parent=1 // pred_region
      _
    $region65: #{tpu_custom_call.1} parent=1 // pred_fallthru
      _
    // Predicated region
    $region66: #{tpu_custom_call.1} parent=1 // pred_check
      _
    $region67: #{tpu_custom_call.1} parent=1 // pred_check_branch
      %116 = sbr.rel (0) target = $region69
    $region68: #{tpu_custom_call.1} parent=1 // pred_region
      %117 = dma.done [#allocation4], 128
    $region69: #{tpu_custom_call.1} parent=1 // pred_fallthru
      _
    // Predicated region
    $region70: #{tpu_custom_call.1} parent=1 // pred_check
      _
    $region71: #{tpu_custom_call.1} parent=1 // pred_check_branch
      %119 = sbr.rel (0) target = $region73
    $region72: #{tpu_custom_call.1} parent=1 // pred_region
      %120 = dma.done [#allocation7], 128
    $region73: #{tpu_custom_call.1} parent=1 // pred_fallthru
      _
    // Predicated region
    $region74: #{tpu_custom_call.1} parent=1 // pred_check
      _
    $region75: #{tpu_custom_call.1} parent=1 // pred_check_branch
      %122 = sbr.rel (0) target = $region77
    $region76: #{tpu_custom_call.1} parent=1 // pred_region
      %123 = dma.done [#allocation7], 1024
    $region77: #{tpu_custom_call.1} parent=1 // pred_fallthru
      _
    // Predicated region
    $region78: #{tpu_custom_call.1} parent=1 // pred_check
      _
    $region79: #{tpu_custom_call.1} parent=1 // pred_check_branch
      %125 = sbr.rel (0) target = $region81
    $region80: #{tpu_custom_call.1} parent=1 // pred_region
      %126 = dma.done [#allocation10], 4096
    $region81: #{tpu_custom_call.1} parent=1 // pred_fallthru
      _
    // Predicated region
    $region82: #{tpu_custom_call.1} parent=1 // pred_check
      _
    $region83: #{tpu_custom_call.1} parent=1 // pred_check_branch
      %128 = sbr.rel (0) target = $region85
    $region84: #{tpu_custom_call.1} parent=1 // pred_region
      %129 = dma.done [#allocation10], 4096
    $region85: #{tpu_custom_call.1} parent=1 // pred_fallthru
      _
    // Predicated region
    $region86: #{tpu_custom_call.1} parent=1 // pred_check
      _
    $region87: #{tpu_custom_call.1} parent=1 // pred_check_branch
      %131 = sbr.rel (0) target = $region89
    $region88: #{tpu_custom_call.1} parent=1 // pred_region
      %132 = dma.done [#allocation13], 1024
    $region89: #{tpu_custom_call.1} parent=1 // pred_fallthru
      _
    %s133 = sld [smem:[#allocation2]]
    %v134 = vld [vmem:[#allocation3] sm:$0xff]
    %v135 = vld [vmem:[#allocation6] sm:$0xff]
    %v136 = vld [vmem:[%s2] sm:$0x1]
    %v138 = vlaneseq
    %v139 = vshrl.u32 %v138, 7
    %v140 = vsub.s32 0, %v139
    %v141 = vrot.slane %v136, %v140
    %vm143 = vcmask 64512
    %v145 = vsel %vm143, %v134, 0
    %147 = vmatprep.subr.mxu0 0.0
    %148 = vmatpush1.msra.mxu0 %v135
    %149 = vmatprep.subr.mxu0 0.0
    %150 = vmatpush1.msra.mxu0 0.0
    %151 = vmatprep.subr.mxu0 0.0
    %152 = vmatpush1.msra.mxu0 0.0
    %153 = vmatprep.subr.mxu0 0.0
    %154 = vmatpush1.msra.mxu0 0.0
    %155 = vmatprep.subr.mxu0 0.0
    %156 = vmatpush1.msra.mxu0 0.0
    %157 = vmatprep.subr.mxu0 0.0
    %158 = vmatpush1.msra.mxu0 0.0
    %159 = vmatprep.subr.mxu0 0.0
    %160 = vmatpush1.msra.mxu0 0.0
    %161 = vmatprep.subr.mxu0 0.0
    %162 = vmatpush1.msra.mxu0 0.0
    %163 = vmatprep.subr.mxu0 0.0
    %164 = vmatpush1.msra.mxu0 0.0
    %165 = vmatprep.subr.mxu0 0.0
    %166 = vmatpush1.msra.mxu0 0.0
    %167 = vmatprep.subr.mxu0 0.0
    %168 = vmatpush1.msra.mxu0 0.0
    %169 = vmatprep.subr.mxu0 0.0
    %170 = vmatpush1.msra.mxu0 0.0
    %171 = vmatprep.subr.mxu0 0.0
    %172 = vmatpush1.msra.mxu0 0.0
    %173 = vmatprep.subr.mxu0 0.0
    %174 = vmatpush1.msra.mxu0 0.0
    %175 = vmatprep.subr.mxu0 0.0
    %176 = vmatpush1.msra.mxu0 0.0
    %177 = vmatprep.subr.mxu0 0.0
    %178 = vmatpush1.msra.mxu0 0.0
    %179 = vmatprep.subr.mxu0 0.0
    %180 = vmatpush1.msra.mxu0 0.0
    %181 = vmatprep.subr.mxu0 0.0
    %182 = vmatpush1.msra.mxu0 0.0
    %183 = vmatprep.subr.mxu0 0.0
    %184 = vmatpush1.msra.mxu0 0.0
    %185 = vmatprep.subr.mxu0 0.0
    %186 = vmatpush1.msra.mxu0 0.0
    %187 = vmatprep.subr.mxu0 0.0
    %188 = vmatpush1.msra.mxu0 0.0
    %189 = vmatprep.subr.mxu0 0.0
    %190 = vmatpush1.msra.mxu0 0.0
    %191 = vmatprep.subr.mxu0 0.0
    %192 = vmatpush1.msra.mxu0 0.0
    %193 = vmatprep.subr.mxu0 0.0
    %194 = vmatpush1.msra.mxu0 0.0
    %195 = vmatprep.subr.mxu0 0.0
    %196 = vmatpush1.msra.mxu0 0.0
    %197 = vmatprep.subr.mxu0 0.0
    %198 = vmatpush1.msra.mxu0 0.0
    %199 = vmatprep.subr.mxu0 0.0
    %200 = vmatpush1.msra.mxu0 0.0
    %201 = vmatprep.subr.mxu0 0.0
    %202 = vmatpush1.msra.mxu0 0.0
    %203 = vmatprep.subr.mxu0 0.0
    %204 = vmatpush1.msra.mxu0 0.0
    %205 = vmatprep.subr.mxu0 0.0
    %206 = vmatpush1.msra.mxu0 0.0
    %207 = vmatprep.subr.mxu0 0.0
    %208 = vmatpush1.msra.mxu0 0.0
    %209 = vmatprep.subr.mxu0 0.0
    %210 = vmatpush1.msra.mxu0 0.0
    %211 = vmatprep.mubr.f32.mxu0 0.0
    %212 = vmatmul.mubr.f32.gmra.mrb[0].mxu0 %v145
    %v213 = vpop.f32.mrb[0].mxu0
    %v214 = vadd.f32 %v141, %v213
    %v215 = vpop.f32.mrb[0].mxu0
    %216 = vdwg.mxu0
    %vm217 = vcmp.gt.f32.partialorder %v214, 0.0
    %v218 = vstv %s133
    %v219 = vmul.f32 %v218, %v214
    %v220 = vsel %vm217, %v214, %v219
    %v221 = vld [vmem:[#allocation8] sm:$0xff]
    %v222 = vld [vmem:[#allocation8 + $0x8] sm:$0xff]
    %v223 = vld [vmem:[#allocation8 + $0x10] sm:$0xff]
    %v224 = vld [vmem:[#allocation8 + $0x18] sm:$0xff]
    %v225 = vld [vmem:[#allocation8 + $0x20] sm:$0xff]
    %v226 = vld [vmem:[#allocation8 + $0x28] sm:$0xff]
    %v227 = vld [vmem:[#allocation8 + $0x30] sm:$0xff]
    %v228 = vld [vmem:[#allocation8 + $0x38] sm:$0xff]
    %v229 = vld [vmem:[%s4] sm:$0x1]
    %v231 = vlaneseq
    %v232 = vshrl.u32 %v231, 7
    %v233 = vsub.s32 0, %v232
    %v234 = vrot.slane %v229, %v233
    %vm236 = vcmask 523264
    %v238 = vsel %vm236, %v220, 0
    %240 = vmatprep.subr.mxu0 0.0
    %241 = vmatpush1.msra.mxu0 %v221
    %242 = vmatprep.subr.mxu0 0.0
    %243 = vmatpush1.msra.mxu0 %v222
    %244 = vmatprep.subr.mxu0 0.0
    %245 = vmatpush1.msra.mxu0 %v223
    %246 = vmatprep.subr.mxu0 0.0
    %247 = vmatpush1.msra.mxu0 %v224
    %248 = vmatprep.subr.mxu0 0.0
    %249 = vmatpush1.msra.mxu0 %v225
    %250 = vmatprep.subr.mxu0 0.0
    %251 = vmatpush1.msra.mxu0 %v226
    %252 = vmatprep.subr.mxu0 0.0
    %253 = vmatpush1.msra.mxu0 %v227
    %254 = vmatprep.subr.mxu0 0.0
    %255 = vmatpush1.msra.mxu0 %v228
    %256 = vmatprep.subr.mxu0 0.0
    %257 = vmatpush1.msra.mxu0 0.0
    %258 = vmatprep.subr.mxu0 0.0
    %259 = vmatpush1.msra.mxu0 0.0
    %260 = vmatprep.subr.mxu0 0.0
    %261 = vmatpush1.msra.mxu0 0.0
    %262 = vmatprep.subr.mxu0 0.0
    %263 = vmatpush1.msra.mxu0 0.0
    %264 = vmatprep.subr.mxu0 0.0
    %265 = vmatpush1.msra.mxu0 0.0
    %266 = vmatprep.subr.mxu0 0.0
    %267 = vmatpush1.msra.mxu0 0.0
    %268 = vmatprep.subr.mxu0 0.0
    %269 = vmatpush1.msra.mxu0 0.0
    %270 = vmatprep.subr.mxu0 0.0
    %271 = vmatpush1.msra.mxu0 0.0
    %272 = vmatprep.subr.mxu0 0.0
    %273 = vmatpush1.msra.mxu0 0.0
    %274 = vmatprep.subr.mxu0 0.0
    %275 = vmatpush1.msra.mxu0 0.0
    %276 = vmatprep.subr.mxu0 0.0
    %277 = vmatpush1.msra.mxu0 0.0
    %278 = vmatprep.subr.mxu0 0.0
    %279 = vmatpush1.msra.mxu0 0.0
    %280 = vmatprep.subr.mxu0 0.0
    %281 = vmatpush1.msra.mxu0 0.0
    %282 = vmatprep.subr.mxu0 0.0
    %283 = vmatpush1.msra.mxu0 0.0
    %284 = vmatprep.subr.mxu0 0.0
    %285 = vmatpush1.msra.mxu0 0.0
    %286 = vmatprep.subr.mxu0 0.0
    %287 = vmatpush1.msra.mxu0 0.0
    %288 = vmatprep.subr.mxu0 0.0
    %289 = vmatpush1.msra.mxu0 0.0
    %290 = vmatprep.subr.mxu0 0.0
    %291 = vmatpush1.msra.mxu0 0.0
    %292 = vmatprep.subr.mxu0 0.0
    %293 = vmatpush1.msra.mxu0 0.0
    %294 = vmatprep.subr.mxu0 0.0
    %295 = vmatpush1.msra.mxu0 0.0
    %296 = vmatprep.subr.mxu0 0.0
    %297 = vmatpush1.msra.mxu0 0.0
    %298 = vmatprep.subr.mxu0 0.0
    %299 = vmatpush1.msra.mxu0 0.0
    %300 = vmatprep.subr.mxu0 0.0
    %301 = vmatpush1.msra.mxu0 0.0
    %302 = vmatprep.subr.mxu0 0.0
    %303 = vmatpush1.msra.mxu0 0.0
    %304 = vmatprep.mubr.f32.mxu0 0.0
    %305 = vmatmul.mubr.f32.gmra.mrb[0].mxu0 %v238
    %v306 = vpop.f32.mrb[0].mxu0
    %v307 = vadd.f32 %v234, %v306
    %v308 = vpop.f32.mrb[0].mxu0
    %309 = vdwg.mxu0
    %vm310 = vcmp.gt.f32.partialorder %v307, 0.0
    %v311 = vmul.f32 %v218, %v307
    %v312 = vsel %vm310, %v307, %v311
    %314 = vrot.lane.b32.xlu0 %v312, 64
    %v315 = vpop.permute.xlu0 %314
    %v317 = vmax.f32 %v312, %v315
    %v318 = vld [vmem:[%s11] sm:$0x1]
    %v319 = vld [vmem:[%s12] sm:$0x1]
    %v320 = vsel %vm236, %v317, 0.0
    %v321 = vrot.slane %v320, 4
    %v322 = vadd.f32 %v320, %v321
    %v323 = vrot.slane %v322, 2
    %v324 = vadd.f32 %v322, %v323
    %v325 = vrot.slane %v324, 1
    %v326 = vadd.f32 %v324, %v325
    %v327 = vrcp.pop 8.0
    %v328 = vmul.f32 %v326, %v327
    %v329 = vsub.f32 %v317, %v328
    %v330 = vmul.f32 %v329, %v329
    %v331 = vsel %vm236, %v330, 0.0
    %v332 = vrot.slane %v331, 4
    %v333 = vadd.f32 %v331, %v332
    %v334 = vrot.slane %v333, 2
    %v335 = vadd.f32 %v333, %v334
    %v336 = vrot.slane %v335, 1
    %v337 = vadd.f32 %v335, %v336
    %v338 = vmul.f32 %v337, %v327
    %v339 = vadd.f32 %v338, 1e-05
    %v340 = vrsqrt.pop %v339
    %v341 = vmul.f32 %v329, %v340
    %v343 = vlaneseq
    %v344 = vshrl.u32 %v343, 7
    %v345 = vsub.s32 0, %v344
    %v346 = vrot.slane %v318, %v345
    %v348 = vmul.f32 %v341, %v346
    %v350 = vlaneseq
    %v351 = vshrl.u32 %v350, 7
    %v352 = vsub.s32 0, %v351
    %v353 = vrot.slane %v319, %v352
    %v355 = vadd.f32 %v348, %v353
    %v356 = vld [vmem:[#allocation9] sm:$0xff]
    %v357 = vld [vmem:[#allocation9 + $0x8] sm:$0xff]
    %v358 = vld [vmem:[#allocation9 + $0x10] sm:$0xff]
    %v359 = vld [vmem:[#allocation9 + $0x18] sm:$0xff]
    %v360 = vld [vmem:[#allocation9 + $0x20] sm:$0xff]
    %v361 = vld [vmem:[#allocation9 + $0x28] sm:$0xff]
    %v362 = vld [vmem:[#allocation9 + $0x30] sm:$0xff]
    %v363 = vld [vmem:[#allocation9 + $0x38] sm:$0xff]
    %v364 = vld [vmem:[#allocation9 + $0x40] sm:$0xff]
    %v365 = vld [vmem:[#allocation9 + $0x48] sm:$0xff]
    %v366 = vld [vmem:[#allocation9 + $0x50] sm:$0xff]
    %v367 = vld [vmem:[#allocation9 + $0x58] sm:$0xff]
    %v368 = vld [vmem:[#allocation9 + $0x60] sm:$0xff]
    %v369 = vld [vmem:[#allocation9 + $0x68] sm:$0xff]
    %v370 = vld [vmem:[#allocation9 + $0x70] sm:$0xff]
    %v371 = vld [vmem:[#allocation9 + $0x78] sm:$0xff]
    %v372 = vld [vmem:[#allocation9 + $0x80] sm:$0xff]
    %v373 = vld [vmem:[#allocation9 + $0x88] sm:$0xff]
    %v374 = vld [vmem:[#allocation9 + $0x90] sm:$0xff]
    %v375 = vld [vmem:[#allocation9 + $0x98] sm:$0xff]
    %v376 = vld [vmem:[#allocation9 + $0xa0] sm:$0xff]
    %v377 = vld [vmem:[#allocation9 + $0xa8] sm:$0xff]
    %v378 = vld [vmem:[#allocation9 + $0xb0] sm:$0xff]
    %v379 = vld [vmem:[#allocation9 + $0xb8] sm:$0xff]
    %v380 = vld [vmem:[#allocation9 + $0xc0] sm:$0xff]
    %v381 = vld [vmem:[#allocation9 + $0xc8] sm:$0xff]
    %v382 = vld [vmem:[#allocation9 + $0xd0] sm:$0xff]
    %v383 = vld [vmem:[#allocation9 + $0xd8] sm:$0xff]
    %v384 = vld [vmem:[#allocation9 + $0xe0] sm:$0xff]
    %v385 = vld [vmem:[#allocation9 + $0xe8] sm:$0xff]
    %v386 = vld [vmem:[#allocation9 + $0xf0] sm:$0xff]
    %v387 = vld [vmem:[#allocation9 + $0xf8] sm:$0xff]
    %v388 = vld [vmem:[%s6] sm:$0xf]
    %v390 = vlaneseq
    %v391 = vshrl.u32 %v390, 7
    %v392 = vsub.s32 0, %v391
    %v393 = vrot.slane %v388, %v392
    %v394 = vlaneseq
    %v395 = vshrl.u32 %v394, 7
    %v396 = vsub.s32 1, %v395
    %v397 = vrot.slane %v388, %v396
    %v398 = vlaneseq
    %v399 = vshrl.u32 %v398, 7
    %v400 = vsub.s32 2, %v399
    %v401 = vrot.slane %v388, %v400
    %v402 = vlaneseq
    %v403 = vshrl.u32 %v402, 7
    %v404 = vsub.s32 3, %v403
    %v405 = vrot.slane %v388, %v404
    %v411 = vsel %vm236, %v355, 0
    %413 = vmatprep.subr.mxu0 %v357
    %414 = vmatpush1.msra.mxu0 %v356
    %415 = vmatprep.subr.mxu0 %v361
    %416 = vmatpush1.msra.mxu0 %v360
    %417 = vmatprep.subr.mxu0 %v365
    %418 = vmatpush1.msra.mxu0 %v364
    %419 = vmatprep.subr.mxu0 %v369
    %420 = vmatpush1.msra.mxu0 %v368
    %421 = vmatprep.subr.mxu0 %v373
    %422 = vmatpush1.msra.mxu0 %v372
    %423 = vmatprep.subr.mxu0 %v377
    %424 = vmatpush1.msra.mxu0 %v376
    %425 = vmatprep.subr.mxu0 %v381
    %426 = vmatpush1.msra.mxu0 %v380
    %427 = vmatprep.subr.mxu0 %v385
    %428 = vmatpush1.msra.mxu0 %v384
    %429 = vmatprep.subr.mxu0 0.0
    %430 = vmatpush1.msra.mxu0 0.0
    %431 = vmatprep.subr.mxu0 0.0
    %432 = vmatpush1.msra.mxu0 0.0
    %433 = vmatprep.subr.mxu0 0.0
    %434 = vmatpush1.msra.mxu0 0.0
    %435 = vmatprep.subr.mxu0 0.0
    %436 = vmatpush1.msra.mxu0 0.0
    %437 = vmatprep.subr.mxu0 0.0
    %438 = vmatpush1.msra.mxu0 0.0
    %439 = vmatprep.subr.mxu0 0.0
    %440 = vmatpush1.msra.mxu0 0.0
    %441 = vmatprep.subr.mxu0 0.0
    %442 = vmatpush1.msra.mxu0 0.0
    %443 = vmatprep.subr.mxu0 0.0
    %444 = vmatpush1.msra.mxu0 0.0
    %445 = vmatprep.subr.mxu0 0.0
    %446 = vmatpush1.msra.mxu0 0.0
    %447 = vmatprep.subr.mxu0 0.0
    %448 = vmatpush1.msra.mxu0 0.0
    %449 = vmatprep.subr.mxu0 0.0
    %450 = vmatpush1.msra.mxu0 0.0
    %451 = vmatprep.subr.mxu0 0.0
    %452 = vmatpush1.msra.mxu0 0.0
    %453 = vmatprep.subr.mxu0 0.0
    %454 = vmatpush1.msra.mxu0 0.0
    %455 = vmatprep.subr.mxu0 0.0
    %456 = vmatpush1.msra.mxu0 0.0
    %457 = vmatprep.subr.mxu0 0.0
    %458 = vmatpush1.msra.mxu0 0.0
    %459 = vmatprep.subr.mxu0 0.0
    %460 = vmatpush1.msra.mxu0 0.0
    %461 = vmatprep.subr.mxu0 0.0
    %462 = vmatpush1.msra.mxu0 0.0
    %463 = vmatprep.subr.mxu0 0.0
    %464 = vmatpush1.msra.mxu0 0.0
    %465 = vmatprep.subr.mxu0 0.0
    %466 = vmatpush1.msra.mxu0 0.0
    %467 = vmatprep.subr.mxu0 0.0
    %468 = vmatpush1.msra.mxu0 0.0
    %469 = vmatprep.subr.mxu0 0.0
    %470 = vmatpush1.msra.mxu0 0.0
    %471 = vmatprep.subr.mxu0 0.0
    %472 = vmatpush1.msra.mxu0 0.0
    %473 = vmatprep.subr.mxu0 0.0
    %474 = vmatpush1.msra.mxu0 0.0
    %475 = vmatprep.subr.mxu0 0.0
    %476 = vmatpush1.msra.mxu0 0.0
    %477 = vmatprep.mubr.f32.mxu0 0.0
    %478 = vmatmul.mubr.f32.gmra.mrb[0].mxu0 %v411
    %v479 = vpop.f32.mrb[0].mxu0
    %v480 = vadd.f32 %v393, %v479
    %v481 = vpop.f32.mrb[0].mxu0
    %v482 = vadd.f32 %v397, %v481
    %483 = vdwg.mxu0
    %484 = vmatprep.subr.mxu0 %v359
    %485 = vmatpush1.msra.mxu0 %v358
    %486 = vmatprep.subr.mxu0 %v363
    %487 = vmatpush1.msra.mxu0 %v362
    %488 = vmatprep.subr.mxu0 %v367
    %489 = vmatpush1.msra.mxu0 %v366
    %490 = vmatprep.subr.mxu0 %v371
    %491 = vmatpush1.msra.mxu0 %v370
    %492 = vmatprep.subr.mxu0 %v375
    %493 = vmatpush1.msra.mxu0 %v374
    %494 = vmatprep.subr.mxu0 %v379
    %495 = vmatpush1.msra.mxu0 %v378
    %496 = vmatprep.subr.mxu0 %v383
    %497 = vmatpush1.msra.mxu0 %v382
    %498 = vmatprep.subr.mxu0 %v387
    %499 = vmatpush1.msra.mxu0 %v386
    %500 = vmatprep.subr.mxu0 0.0
    %501 = vmatpush1.msra.mxu0 0.0
    %502 = vmatprep.subr.mxu0 0.0
    %503 = vmatpush1.msra.mxu0 0.0
    %504 = vmatprep.subr.mxu0 0.0
    %505 = vmatpush1.msra.mxu0 0.0
    %506 = vmatprep.subr.mxu0 0.0
    %507 = vmatpush1.msra.mxu0 0.0
    %508 = vmatprep.subr.mxu0 0.0
    %509 = vmatpush1.msra.mxu0 0.0
    %510 = vmatprep.subr.mxu0 0.0
    %511 = vmatpush1.msra.mxu0 0.0
    %512 = vmatprep.subr.mxu0 0.0
    %513 = vmatpush1.msra.mxu0 0.0
    %514 = vmatprep.subr.mxu0 0.0
    %515 = vmatpush1.msra.mxu0 0.0
    %516 = vmatprep.subr.mxu0 0.0
    %517 = vmatpush1.msra.mxu0 0.0
    %518 = vmatprep.subr.mxu0 0.0
    %519 = vmatpush1.msra.mxu0 0.0
    %520 = vmatprep.subr.mxu0 0.0
    %521 = vmatpush1.msra.mxu0 0.0
    %522 = vmatprep.subr.mxu0 0.0
    %523 = vmatpush1.msra.mxu0 0.0
    %524 = vmatprep.subr.mxu0 0.0
    %525 = vmatpush1.msra.mxu0 0.0
    %526 = vmatprep.subr.mxu0 0.0
    %527 = vmatpush1.msra.mxu0 0.0
    %528 = vmatprep.subr.mxu0 0.0
    %529 = vmatpush1.msra.mxu0 0.0
    %530 = vmatprep.subr.mxu0 0.0
    %531 = vmatpush1.msra.mxu0 0.0
    %532 = vmatprep.subr.mxu0 0.0
    %533 = vmatpush1.msra.mxu0 0.0
    %534 = vmatprep.subr.mxu0 0.0
    %535 = vmatpush1.msra.mxu0 0.0
    %536 = vmatprep.subr.mxu0 0.0
    %537 = vmatpush1.msra.mxu0 0.0
    %538 = vmatprep.subr.mxu0 0.0
    %539 = vmatpush1.msra.mxu0 0.0
    %540 = vmatprep.subr.mxu0 0.0
    %541 = vmatpush1.msra.mxu0 0.0
    %542 = vmatprep.subr.mxu0 0.0
    %543 = vmatpush1.msra.mxu0 0.0
    %544 = vmatprep.subr.mxu0 0.0
    %545 = vmatpush1.msra.mxu0 0.0
    %546 = vmatprep.subr.mxu0 0.0
    %547 = vmatpush1.msra.mxu0 0.0
    %548 = vmatprep.mubr.f32.mxu0 0.0
    %549 = vmatmul.mubr.f32.gmra.mrb[0].mxu0 %v411
    %v550 = vpop.f32.mrb[0].mxu0
    %v551 = vadd.f32 %v401, %v550
    %v552 = vpop.f32.mrb[0].mxu0
    %v553 = vadd.f32 %v405, %v552
    %554 = vdwg.mxu0
    %vm555 = vcmp.gt.f32.partialorder %v480, 0.0
    %vm556 = vcmp.gt.f32.partialorder %v482, 0.0
    %vm557 = vcmp.gt.f32.partialorder %v551, 0.0
    %vm558 = vcmp.gt.f32.partialorder %v553, 0.0
    %v559 = vmul.f32 %v218, %v480
    %v560 = vmul.f32 %v218, %v482
    %v561 = vmul.f32 %v218, %v551
    %v562 = vmul.f32 %v218, %v553
    %v563 = vsel %vm555, %v480, %v559
    %v564 = vsel %vm556, %v482, %v560
    %v565 = vsel %vm557, %v551, %v561
    %v566 = vsel %vm558, %v553, %v562
    %v567 = vmax.f32 %v563, %v565
    %v568 = vmax.f32 %v564, %v566
    %v569 = vld [vmem:[%s13] sm:$0x3]
    %v570 = vld [vmem:[%s14] sm:$0x3]
    %v571 = vrot.slane %v567, 4
    %v572 = vadd.f32 %v567, %v571
    %v573 = vrot.slane %v572, 2
    %v574 = vadd.f32 %v572, %v573
    %v575 = vrot.slane %v574, 1
    %v576 = vadd.f32 %v574, %v575
    %v577 = vrot.slane %v568, 4
    %v578 = vadd.f32 %v568, %v577
    %v579 = vrot.slane %v578, 2
    %v580 = vadd.f32 %v578, %v579
    %v581 = vrot.slane %v580, 1
    %v582 = vadd.f32 %v580, %v581
    %v583 = vmul.f32 %v576, %v327
    %v584 = vmul.f32 %v582, %v327
    %v585 = vsub.f32 %v567, %v583
    %v586 = vsub.f32 %v568, %v584
    %v587 = vmul.f32 %v585, %v585
    %v588 = vmul.f32 %v586, %v586
    %v589 = vrot.slane %v587, 4
    %v590 = vadd.f32 %v587, %v589
    %v591 = vrot.slane %v590, 2
    %v592 = vadd.f32 %v590, %v591
    %v593 = vrot.slane %v592, 1
    %v594 = vadd.f32 %v592, %v593
    %v595 = vrot.slane %v588, 4
    %v596 = vadd.f32 %v588, %v595
    %v597 = vrot.slane %v596, 2
    %v598 = vadd.f32 %v596, %v597
    %v599 = vrot.slane %v598, 1
    %v600 = vadd.f32 %v598, %v599
    %v601 = vmul.f32 %v594, %v327
    %v602 = vmul.f32 %v600, %v327
    %v603 = vadd.f32 %v601, 1e-05
    %v604 = vadd.f32 %v602, 1e-05
    %v605 = vrsqrt.pop %v603
    %v606 = vrsqrt.pop %v604
    %v607 = vmul.f32 %v585, %v605
    %v608 = vmul.f32 %v586, %v606
    %v610 = vlaneseq
    %v611 = vshrl.u32 %v610, 7
    %v612 = vsub.s32 0, %v611
    %v613 = vrot.slane %v569, %v612
    %v614 = vlaneseq
    %v615 = vshrl.u32 %v614, 7
    %v616 = vsub.s32 1, %v615
    %v617 = vrot.slane %v569, %v616
    %v620 = vmul.f32 %v607, %v613
    %v621 = vmul.f32 %v608, %v617
    %v623 = vlaneseq
    %v624 = vshrl.u32 %v623, 7
    %v625 = vsub.s32 0, %v624
    %v626 = vrot.slane %v570, %v625
    %v627 = vlaneseq
    %v628 = vshrl.u32 %v627, 7
    %v629 = vsub.s32 1, %v628
    %v630 = vrot.slane %v570, %v629
    %v633 = vadd.f32 %v620, %v626
    %v634 = vadd.f32 %v621, %v630
    %v635 = vld [vmem:[#allocation11] sm:$0xff]
    %v636 = vld [vmem:[#allocation11 + $0x8] sm:$0xff]
    %v637 = vld [vmem:[#allocation11 + $0x10] sm:$0xff]
    %v638 = vld [vmem:[#allocation11 + $0x18] sm:$0xff]
    %v639 = vld [vmem:[#allocation11 + $0x20] sm:$0xff]
    %v640 = vld [vmem:[#allocation11 + $0x28] sm:$0xff]
    %v641 = vld [vmem:[#allocation11 + $0x30] sm:$0xff]
    %v642 = vld [vmem:[#allocation11 + $0x38] sm:$0xff]
    %v643 = vld [vmem:[#allocation11 + $0x40] sm:$0xff]
    %v644 = vld [vmem:[#allocation11 + $0x48] sm:$0xff]
    %v645 = vld [vmem:[#allocation11 + $0x50] sm:$0xff]
    %v646 = vld [vmem:[#allocation11 + $0x58] sm:$0xff]
    %v647 = vld [vmem:[#allocation11 + $0x60] sm:$0xff]
    %v648 = vld [vmem:[#allocation11 + $0x68] sm:$0xff]
    %v649 = vld [vmem:[#allocation11 + $0x70] sm:$0xff]
    %v650 = vld [vmem:[#allocation11 + $0x78] sm:$0xff]
    %v651 = vld [vmem:[#allocation11 + $0x80] sm:$0xff]
    %v652 = vld [vmem:[#allocation11 + $0x88] sm:$0xff]
    %v653 = vld [vmem:[#allocation11 + $0x90] sm:$0xff]
    %v654 = vld [vmem:[#allocation11 + $0x98] sm:$0xff]
    %v655 = vld [vmem:[#allocation11 + $0xa0] sm:$0xff]
    %v656 = vld [vmem:[#allocation11 + $0xa8] sm:$0xff]
    %v657 = vld [vmem:[#allocation11 + $0xb0] sm:$0xff]
    %v658 = vld [vmem:[#allocation11 + $0xb8] sm:$0xff]
    %v659 = vld [vmem:[#allocation11 + $0xc0] sm:$0xff]
    %v660 = vld [vmem:[#allocation11 + $0xc8] sm:$0xff]
    %v661 = vld [vmem:[#allocation11 + $0xd0] sm:$0xff]
    %v662 = vld [vmem:[#allocation11 + $0xd8] sm:$0xff]
    %v663 = vld [vmem:[#allocation11 + $0xe0] sm:$0xff]
    %v664 = vld [vmem:[#allocation11 + $0xe8] sm:$0xff]
    %v665 = vld [vmem:[#allocation11 + $0xf0] sm:$0xff]
    %v666 = vld [vmem:[#allocation11 + $0xf8] sm:$0xff]
    %v667 = vld [vmem:[%s8] sm:$0x1]
    %v669 = vlaneseq
    %v670 = vshrl.u32 %v669, 7
    %v671 = vsub.s32 0, %v670
    %v672 = vrot.slane %v667, %v671
    %674 = vmatprep.subr.mxu0 0.0
    %675 = vmatpush1.msra.mxu0 %v635
    %676 = vmatprep.subr.mxu0 0.0
    %677 = vmatpush1.msra.mxu0 %v636
    %678 = vmatprep.subr.mxu0 0.0
    %679 = vmatpush1.msra.mxu0 %v637
    %680 = vmatprep.subr.mxu0 0.0
    %681 = vmatpush1.msra.mxu0 %v638
    %682 = vmatprep.subr.mxu0 0.0
    %683 = vmatpush1.msra.mxu0 %v639
    %684 = vmatprep.subr.mxu0 0.0
    %685 = vmatpush1.msra.mxu0 %v640
    %686 = vmatprep.subr.mxu0 0.0
    %687 = vmatpush1.msra.mxu0 %v641
    %688 = vmatprep.subr.mxu0 0.0
    %689 = vmatpush1.msra.mxu0 %v642
    %690 = vmatprep.subr.mxu0 0.0
    %691 = vmatpush1.msra.mxu0 %v643
    %692 = vmatprep.subr.mxu0 0.0
    %693 = vmatpush1.msra.mxu0 %v644
    %694 = vmatprep.subr.mxu0 0.0
    %695 = vmatpush1.msra.mxu0 %v645
    %696 = vmatprep.subr.mxu0 0.0
    %697 = vmatpush1.msra.mxu0 %v646
    %698 = vmatprep.subr.mxu0 0.0
    %699 = vmatpush1.msra.mxu0 %v647
    %700 = vmatprep.subr.mxu0 0.0
    %701 = vmatpush1.msra.mxu0 %v648
    %702 = vmatprep.subr.mxu0 0.0
    %703 = vmatpush1.msra.mxu0 %v649
    %704 = vmatprep.subr.mxu0 0.0
    %705 = vmatpush1.msra.mxu0 %v650
    %706 = vmatprep.subr.mxu0 0.0
    %707 = vmatpush1.msra.mxu0 %v651
    %708 = vmatprep.subr.mxu0 0.0
    %709 = vmatpush1.msra.mxu0 %v652
    %710 = vmatprep.subr.mxu0 0.0
    %711 = vmatpush1.msra.mxu0 %v653
    %712 = vmatprep.subr.mxu0 0.0
    %713 = vmatpush1.msra.mxu0 %v654
    %714 = vmatprep.subr.mxu0 0.0
    %715 = vmatpush1.msra.mxu0 %v655
    %716 = vmatprep.subr.mxu0 0.0
    %717 = vmatpush1.msra.mxu0 %v656
    %718 = vmatprep.subr.mxu0 0.0
    %719 = vmatpush1.msra.mxu0 %v657
    %720 = vmatprep.subr.mxu0 0.0
    %721 = vmatpush1.msra.mxu0 %v658
    %722 = vmatprep.subr.mxu0 0.0
    %723 = vmatpush1.msra.mxu0 %v659
    %724 = vmatprep.subr.mxu0 0.0
    %725 = vmatpush1.msra.mxu0 %v660
    %726 = vmatprep.subr.mxu0 0.0
    %727 = vmatpush1.msra.mxu0 %v661
    %728 = vmatprep.subr.mxu0 0.0
    %729 = vmatpush1.msra.mxu0 %v662
    %730 = vmatprep.subr.mxu0 0.0
    %731 = vmatpush1.msra.mxu0 %v663
    %732 = vmatprep.subr.mxu0 0.0
    %733 = vmatpush1.msra.mxu0 %v664
    %734 = vmatprep.subr.mxu0 0.0
    %735 = vmatpush1.msra.mxu0 %v665
    %736 = vmatprep.subr.mxu0 0.0
    %737 = vmatpush1.msra.mxu0 %v666
    %738 = vmatprep.mubr.f32.mxu0 %v634
    %739 = vmatmul.mubr.f32.gmra.mrb[0].mxu0 %v633
    %v740 = vpop.f32.mrb[0].mxu0
    %v741 = vadd.f32 %v672, %v740
    %v742 = vpop.f32.mrb[0].mxu0
    %743 = vdwg.mxu0
    %vm744 = vcmp.gt.f32.partialorder %v741, 0.0
    %v745 = vmul.f32 %v218, %v741
    %v746 = vsel %vm744, %v741, %v745
    %748 = vrot.lane.b32.xlu0 %v746, 64
    %v749 = vpop.permute.xlu0 %748
    %v751 = vmax.f32 %v746, %v749
    %v752 = vsel %vm236, %v751, 0.0
    %v753 = vrot.slane %v752, 4
    %v754 = vadd.f32 %v752, %v753
    %v755 = vrot.slane %v754, 2
    %v756 = vadd.f32 %v754, %v755
    %v757 = vrot.slane %v756, 1
    %v758 = vadd.f32 %v756, %v757
    %v759 = vmul.f32 %v758, %v327
    %v760 = vsub.f32 %v751, %v759
    %v761 = vmul.f32 %v760, %v760
    %v762 = vsel %vm236, %v761, 0.0
    %v763 = vrot.slane %v762, 4
    %v764 = vadd.f32 %v762, %v763
    %v765 = vrot.slane %v764, 2
    %v766 = vadd.f32 %v764, %v765
    %v767 = vrot.slane %v766, 1
    %v768 = vadd.f32 %v766, %v767
    %v769 = vmul.f32 %v768, %v327
    %v770 = vadd.f32 %v769, 1e-05
    %v771 = vrsqrt.pop %v770
    %v772 = vmul.f32 %v760, %v771
    %v773 = vmul.f32 %v772, %v346
    %v774 = vadd.f32 %v773, %v353
    %v775 = vld [vmem:[#allocation12] sm:$0xff]
    %v776 = vld [vmem:[#allocation12 + $0x8] sm:$0xff]
    %v777 = vld [vmem:[#allocation12 + $0x10] sm:$0xff]
    %v778 = vld [vmem:[#allocation12 + $0x18] sm:$0xff]
    %v779 = vld [vmem:[#allocation12 + $0x20] sm:$0xff]
    %v780 = vld [vmem:[#allocation12 + $0x28] sm:$0xff]
    %v781 = vld [vmem:[#allocation12 + $0x30] sm:$0xff]
    %v782 = vld [vmem:[#allocation12 + $0x38] sm:$0xff]
    %v783 = vld [vmem:[%s10] sm:$0x1]
    %v785 = vlaneseq
    %v786 = vshrl.u32 %v785, 7
    %v787 = vsub.s32 0, %v786
    %v788 = vrot.slane %v783, %v787
    %v791 = vsel %vm236, %v774, 0
    %793 = vmatprep.subr.mxu0 0.0
    %794 = vmatpush1.msra.mxu0 %v775
    %795 = vmatprep.subr.mxu0 0.0
    %796 = vmatpush1.msra.mxu0 %v776
    %797 = vmatprep.subr.mxu0 0.0
    %798 = vmatpush1.msra.mxu0 %v777
    %799 = vmatprep.subr.mxu0 0.0
    %800 = vmatpush1.msra.mxu0 %v778
    %801 = vmatprep.subr.mxu0 0.0
    %802 = vmatpush1.msra.mxu0 %v779
    %803 = vmatprep.subr.mxu0 0.0
    %804 = vmatpush1.msra.mxu0 %v780
    %805 = vmatprep.subr.mxu0 0.0
    %806 = vmatpush1.msra.mxu0 %v781
    %807 = vmatprep.subr.mxu0 0.0
    %808 = vmatpush1.msra.mxu0 %v782
    %809 = vmatprep.subr.mxu0 0.0
    %810 = vmatpush1.msra.mxu0 0.0
    %811 = vmatprep.subr.mxu0 0.0
    %812 = vmatpush1.msra.mxu0 0.0
    %813 = vmatprep.subr.mxu0 0.0
    %814 = vmatpush1.msra.mxu0 0.0
    %815 = vmatprep.subr.mxu0 0.0
    %816 = vmatpush1.msra.mxu0 0.0
    %817 = vmatprep.subr.mxu0 0.0
    %818 = vmatpush1.msra.mxu0 0.0
    %819 = vmatprep.subr.mxu0 0.0
    %820 = vmatpush1.msra.mxu0 0.0
    %821 = vmatprep.subr.mxu0 0.0
    %822 = vmatpush1.msra.mxu0 0.0
    %823 = vmatprep.subr.mxu0 0.0
    %824 = vmatpush1.msra.mxu0 0.0
    %825 = vmatprep.subr.mxu0 0.0
    %826 = vmatpush1.msra.mxu0 0.0
    %827 = vmatprep.subr.mxu0 0.0
    %828 = vmatpush1.msra.mxu0 0.0
    %829 = vmatprep.subr.mxu0 0.0
    %830 = vmatpush1.msra.mxu0 0.0
    %831 = vmatprep.subr.mxu0 0.0
    %832 = vmatpush1.msra.mxu0 0.0
    %833 = vmatprep.subr.mxu0 0.0
    %834 = vmatpush1.msra.mxu0 0.0
    %835 = vmatprep.subr.mxu0 0.0
    %836 = vmatpush1.msra.mxu0 0.0
    %837 = vmatprep.subr.mxu0 0.0
    %838 = vmatpush1.msra.mxu0 0.0
    %839 = vmatprep.subr.mxu0 0.0
    %840 = vmatpush1.msra.mxu0 0.0
    %841 = vmatprep.subr.mxu0 0.0
    %842 = vmatpush1.msra.mxu0 0.0
    %843 = vmatprep.subr.mxu0 0.0
    %844 = vmatpush1.msra.mxu0 0.0
    %845 = vmatprep.subr.mxu0 0.0
    %846 = vmatpush1.msra.mxu0 0.0
    %847 = vmatprep.subr.mxu0 0.0
    %848 = vmatpush1.msra.mxu0 0.0
    %849 = vmatprep.subr.mxu0 0.0
    %850 = vmatpush1.msra.mxu0 0.0
    %851 = vmatprep.subr.mxu0 0.0
    %852 = vmatpush1.msra.mxu0 0.0
    %853 = vmatprep.subr.mxu0 0.0
    %854 = vmatpush1.msra.mxu0 0.0
    %855 = vmatprep.subr.mxu0 0.0
    %856 = vmatpush1.msra.mxu0 0.0
    %857 = vmatprep.mubr.f32.mxu0 0.0
    %858 = vmatmul.mubr.f32.gmra.mrb[0].mxu0 %v791
    %v859 = vpop.f32.mrb[0].mxu0
    %v860 = vadd.f32 %v788, %v859
    %v861 = vpop.f32.mrb[0].mxu0
    %862 = vdwg.mxu0
    %863 = vst [vmem:[#allocation14] sm:$0xff] %v860
    // Predicated region
    $region90: #{tpu_custom_call.1} parent=1 // pred_check
      _
    $region91: #{tpu_custom_call.1} parent=1 // pred_check_branch
      %865 = sbr.rel (0) target = $region93
    $region92: #{tpu_custom_call.1} parent=1 // pred_region
      %s867 = ssub.s32 128, 128
      %868 = vsyncadd [#allocation5], %s867
      %s870 = sshll.u32 [#allocation14], 4
      %s871 = int_to_ptr.vmem [resolvable:$true] %s870
      %873 = dma.vmem_to_hbm [thread:$0]  %s871, 128, %s16, [#allocation5]
    $region93: #{tpu_custom_call.1} parent=1 // pred_fallthru
      _
    // Predicated region
    $region94: #{tpu_custom_call.1} parent=1 // pred_check
      _
    $region95: #{tpu_custom_call.1} parent=1 // pred_check_branch
      %875 = sbr.rel (0) target = $region97
    $region96: #{tpu_custom_call.1} parent=1 // pred_region
      %876 = dma.done [#allocation5], 128
    $region97: #{tpu_custom_call.1} parent=1 // pred_fallthru
      _
    %877 = vsyncpa [#allocation4], 1
    %878 = vsyncpa [#allocation7], 1
    %879 = vsyncpa [#allocation10], 1
    %880 = vsyncpa [#allocation13], 1
    %881 = vsyncpa [#allocation5], 1

</llo_original>
